<compile_context>
chip_gen: v7x
topology: tpu7x:2x2x1
jax: 0.10.0
libtpu: 0.0.40
codegen_flags: <defaults>
</compile_context>

<pallas_src>
import functools
import math

import jax
import jax.numpy as jnp
from jax.experimental import pallas as pl
from jax.experimental.pallas import tpu as pltpu


_ROW_ALIGN = 16  # bf16-friendly sublane multiple for the row tile


def _round_up(x, m):
    return (x + m - 1) // m * m


def _fused_mlp_kernel(x_ref, *refs, num_layers, last_layer_linear):
    """All LipshitzMLP layers applied to one (TILE_N, in_c) row tile.

    x_ref          : (TILE_N, in_c)   f32   input rows (cast to bf16 in-kernel)
    refs[:L]       : (in_i, out_i)    bf16  pre-normalized weights, (in, out) layout
    refs[L:2L]     : (1, out_i)       f32   biases
    refs[2L]       : (TILE_N, out_L)  f32   output rows
    """
    w_refs = refs[:num_layers]
    b_refs = refs[num_layers:2 * num_layers]
    o_ref = refs[2 * num_layers]

    inv_sqrt2 = 1.0 / math.sqrt(2.0)
    h = x_ref[...].astype(jnp.bfloat16)               # bf16 only for the MXU input
    for i in range(num_layers):
        # MXU: bf16 x bf16 -> f32 accumulate.  W is (in, out): contraction (1,)x(0,)
        # keeps the RHS MXU-natural and the result lane-dense in out-features.
        y = jax.lax.dot_general(
            h, w_refs[i][...],
            dimension_numbers=(((1,), (0,)), ((), ())),
            preferred_element_type=jnp.float32,
        )
        y = y + b_refs[i][...]                        # f32 elementwise (broadcast (1, out_i))
        is_last = i == num_layers - 1
        if not (is_last and last_layer_linear):
            # exact erf-based GELU (torch.nn.functional.gelu default), f32 math on VPU/EUP.
            y = 0.5 * y * (1.0 + jax.lax.erf(y * inv_sqrt2))
        if is_last:
            o_ref[...] = y.astype(o_ref.dtype)
        else:
            h = y.astype(jnp.bfloat16)                # back to bf16 only for the next MXU pass


def lipshitz_mlp_forward(x, weights, biases, cs, last_layer_linear, *, tile_n=4096):
    """Fused forward pass. weights[i]: (out_i, in_i) PyTorch layout; biases[i]: (out_i,)."""
    n_orig, in_c = x.shape
    num_layers = len(weights)
    out_c_last = weights[-1].shape[0]

    # ---- hoisted Lipschitz normalization (depends only on W and c, done once) ----
    w_n, b_n = [], []
    for i in range(num_layers):
        w = weights[i].astype(jnp.float32)                       # (out, in)
        softplus_ci = jax.nn.softplus(cs[i][0])
        absrowsum = jnp.sum(jnp.abs(w), axis=1, keepdims=True)   # (out, 1)
        scale = jnp.minimum(softplus_ci / absrowsum, 1.0)        # clamp(max=1.0)
        w_n.append((w * scale).T.astype(jnp.bfloat16))           # (in, out) -> MXU-natural
        b_n.append(biases[i].astype(jnp.float32).reshape(1, -1)) # (1, out)

    # ---- rows: only tiny batches get padded (block must not exceed the array) ----
    x_in, n = x, n_orig
    if n < _ROW_ALIGN:
        x_in = jnp.pad(x, ((0, _ROW_ALIGN - n), (0, 0)))
        n = _ROW_ALIGN

    # Row tile: large (amortize ~0.35 us/step), 16-aligned, capped so the grid has
    # >= 2 steps when the batch allows it (both v7x TensorCores get work).
    tile = min(tile_n, _round_up(n, _ROW_ALIGN))
    half = _round_up(-(-n // 2), _ROW_ALIGN)
    tile = min(tile, half)
    tile = _round_up(max(tile, _ROW_ALIGN), _ROW_ALIGN)
    # Ragged last block is fine: OOB input rows read garbage, OOB output rows are dropped.
    grid = (pl.cdiv(n, tile),)

    kernel = functools.partial(
        _fused_mlp_kernel, num_layers=num_layers, last_layer_linear=last_layer_linear
    )

    n_act = num_layers - 1 if last_layer_linear else num_layers
    cost = pl.CostEstimate(
        flops=2 * n * sum(w.shape[0] * w.shape[1] for w in weights),
        transcendentals=n * sum(weights[i].shape[0] for i in range(n_act)),
        bytes_accessed=(n * in_c * 4
                        + sum(w.size * 2 for w in w_n)
                        + sum(b.size * 4 for b in b_n)
                        + n * out_c_last * 4),
    )

    in_specs = [pl.BlockSpec((tile, in_c), lambda i: (i, 0))]          # tiled over N
    # weights / biases: full-array blocks + constant index map -> resident in VMEM,
    # fetched once, never re-DMA'd across grid steps.
    in_specs += [pl.BlockSpec(w.shape, lambda i: (0, 0)) for w in w_n]
    in_specs += [pl.BlockSpec(b.shape, lambda i: (0, 0)) for b in b_n]

    out = pl.pallas_call(
        kernel,
        out_shape=jax.ShapeDtypeStruct((n, out_c_last), jnp.float32),
        grid_spec=pltpu.PrefetchScalarGridSpec(
            num_scalar_prefetch=0,
            grid=grid,
            in_specs=in_specs,
            out_specs=pl.BlockSpec((tile, out_c_last), lambda i: (i, 0)),
        ),
        compiler_params=pltpu.CompilerParams(
            dimension_semantics=("parallel",),          # megacore / 2-TC sharding on v7x
            vmem_limit_bytes=32 * 1024 * 1024,          # tile footprint is a few MiB; safe on v5e/v6e/v7x
        ),
        cost_estimate=cost,
    )(x_in, *w_n, *b_n)

    if n != n_orig:
        out = out[:n_orig]
    return out


def init_lipshitz_mlp(key, in_channels, nr_out_channels_per_layer, last_layer_linear):
    """Deterministic synthetic init mirroring __init__ (kaiming-style weights,
    zero biases, c_i = 2 * max_row(sum|W_i|))."""
    weights, biases, cs = [], [], []
    cur_in = in_channels
    n_layers = len(nr_out_channels_per_layer)
    for i, out_c in enumerate(nr_out_channels_per_layer):
        key, sub = jax.random.split(key)
        is_last = i == n_layers - 1
        gain = 1.0 if (is_last and last_layer_linear) else math.sqrt(2.0)
        std = gain / math.sqrt(cur_in)
        w = std * jax.random.normal(sub, (out_c, cur_in), dtype=jnp.float32)
        b = jnp.zeros((out_c,), dtype=jnp.float32)
        max_w = jnp.max(jnp.sum(jnp.abs(w), axis=1))
        c = jnp.ones((1,), jnp.float32) * max_w * 2.0
        weights.append(w)
        biases.append(b)
        cs.append(c)
        cur_in = out_c
    return weights, biases, cs


def lipshitz_mlp_reference(x, weights, biases, cs, last_layer_linear):
    """Pure-JAX f32 reference of the PyTorch forward."""
    n_layers = len(weights)
    for i in range(n_layers):
        w, b = weights[i], biases[i]
        softplus_ci = jax.nn.softplus(cs[i][0])
        absrowsum = jnp.sum(jnp.abs(w), axis=1)
        scale = jnp.minimum(softplus_ci / absrowsum, 1.0)
        w = w * scale[:, None]
        x = x @ w.T + b
        is_last = i == n_layers - 1
        if not (is_last and last_layer_linear):
            x = jax.nn.gelu(x, approximate=False)
    return x


if __name__ == "__main__":
    key = jax.random.PRNGKey(0)

    in_channels = 32
    nr_out_channels_per_layer = [64, 64, 16]
    last_layer_linear = True
    batch = 8

    key, k_init, k_x = jax.random.split(key, 3)
    weights, biases, cs = init_lipshitz_mlp(
        k_init, in_channels, nr_out_channels_per_layer, last_layer_linear
    )
    x = jax.random.normal(k_x, (batch, in_channels), dtype=jnp.float32)

    fwd = jax.jit(
        functools.partial(lipshitz_mlp_forward, last_layer_linear=last_layer_linear)
    )
    out = fwd(x, weights, biases, cs)
    out = jax.block_until_ready(out)

    ref = lipshitz_mlp_reference(x, weights, biases, cs, last_layer_linear)
    ref = jax.block_until_ready(ref)

    assert out.shape == (batch, nr_out_channels_per_layer[-1])
    # Tolerance accounts for bf16 MXU inputs (f32 accumulation) vs. the pure-f32 reference.
    assert jnp.allclose(out, ref, rtol=5e-2, atol=5e-2), "kernel/reference mismatch"

    print("KERNEL_OK")
</pallas_src>

<mosaic_0001>
module attributes {stable_mosaic.version = 11 : i64} {
  func.func @_fused_mlp_kernel(%arg0: i32, %arg1: memref<16x32xf32, #tpu.memory_space<vmem>>, %arg2: memref<32x64xbf16, #tpu.memory_space<vmem>>, %arg3: memref<64x64xbf16, #tpu.memory_space<vmem>>, %arg4: memref<64x16xbf16, #tpu.memory_space<vmem>>, %arg5: memref<1x64xf32, #tpu.memory_space<vmem>>, %arg6: memref<1x64xf32, #tpu.memory_space<vmem>>, %arg7: memref<1x16xf32, #tpu.memory_space<vmem>>, %arg8: memref<16x16xf32, #tpu.memory_space<vmem>>) attributes {dimension_semantics = [#tpu.dimension_semantics<parallel>], iteration_bounds = array<i64: 1>, scalar_prefetch = 0 : i64, scratch_operands = 0 : i64, tpu.core_type = #tpu.core_type<tc>, window_params = [{transform_indices = @transform_0, window_bounds = array<i64: 16, 32>}, {pipeline_mode = #tpu.pipeline_mode<synchronous>, transform_indices = @transform_1, window_bounds = array<i64: 32, 64>}, {pipeline_mode = #tpu.pipeline_mode<synchronous>, transform_indices = @transform_2, window_bounds = array<i64: 64, 64>}, {pipeline_mode = #tpu.pipeline_mode<synchronous>, transform_indices = @transform_3, window_bounds = array<i64: 64, 16>}, {pipeline_mode = #tpu.pipeline_mode<synchronous>, transform_indices = @transform_4, window_bounds = array<i64: 1, 64>}, {pipeline_mode = #tpu.pipeline_mode<synchronous>, transform_indices = @transform_5, window_bounds = array<i64: 1, 64>}, {pipeline_mode = #tpu.pipeline_mode<synchronous>, transform_indices = @transform_6, window_bounds = array<i64: 1, 16>}, {transform_indices = @transform_7, window_bounds = array<i64: 16, 16>}]} {
    %c0 = arith.constant 0 : index
    %c0_0 = arith.constant 0 : index
    %0 = vector.load %arg1[%c0, %c0_0] : memref<16x32xf32, #tpu.memory_space<vmem>>, vector<16x32xf32>
    %1 = arith.truncf %0 : vector<16x32xf32> to vector<16x32xbf16>
    %c0_1 = arith.constant 0 : index
    %c0_2 = arith.constant 0 : index
    %2 = vector.load %arg2[%c0_1, %c0_2] : memref<32x64xbf16, #tpu.memory_space<vmem>>, vector<32x64xbf16>
    %cst = arith.constant dense<0.000000e+00> : vector<16x64xf32>
    %3 = tpu.matmul %1, %2, %cst {dimension_numbers = #tpu.dot_dimension_numbers<[1], [0], [0], [1], [0, 0, 1, 1], [], []>} : vector<16x32xbf16>, vector<32x64xbf16>, vector<16x64xf32> -> vector<16x64xf32>
    %c0_3 = arith.constant 0 : index
    %c0_4 = arith.constant 0 : index
    %4 = vector.load %arg5[%c0_3, %c0_4] : memref<1x64xf32, #tpu.memory_space<vmem>>, vector<1x64xf32>
    %5 = vector.broadcast %4 : vector<1x64xf32> to vector<16x64xf32>
    %6 = arith.addf %3, %5 : vector<16x64xf32>
    %cst_5 = arith.constant 5.000000e-01 : f32
    %7 = vector.broadcast %cst_5 : f32 to vector<16x64xf32>
    %8 = arith.mulf %7, %6 : vector<16x64xf32>
    %cst_6 = arith.constant 0.707106769 : f32
    %9 = vector.broadcast %cst_6 : f32 to vector<16x64xf32>
    %10 = arith.mulf %6, %9 : vector<16x64xf32>
    %11 = math.erf %10 : vector<16x64xf32>
    %cst_7 = arith.constant 1.000000e+00 : f32
    %12 = vector.broadcast %cst_7 : f32 to vector<16x64xf32>
    %13 = arith.addf %12, %11 : vector<16x64xf32>
    %14 = arith.mulf %8, %13 : vector<16x64xf32>
    %15 = arith.truncf %14 : vector<16x64xf32> to vector<16x64xbf16>
    %c0_8 = arith.constant 0 : index
    %c0_9 = arith.constant 0 : index
    %16 = vector.load %arg3[%c0_8, %c0_9] : memref<64x64xbf16, #tpu.memory_space<vmem>>, vector<64x64xbf16>
    %cst_10 = arith.constant dense<0.000000e+00> : vector<16x64xf32>
    %17 = tpu.matmul %15, %16, %cst_10 {dimension_numbers = #tpu.dot_dimension_numbers<[1], [0], [0], [1], [0, 0, 1, 1], [], []>} : vector<16x64xbf16>, vector<64x64xbf16>, vector<16x64xf32> -> vector<16x64xf32>
    %c0_11 = arith.constant 0 : index
    %c0_12 = arith.constant 0 : index
    %18 = vector.load %arg6[%c0_11, %c0_12] : memref<1x64xf32, #tpu.memory_space<vmem>>, vector<1x64xf32>
    %19 = vector.broadcast %18 : vector<1x64xf32> to vector<16x64xf32>
    %20 = arith.addf %17, %19 : vector<16x64xf32>
    %cst_13 = arith.constant 5.000000e-01 : f32
    %21 = vector.broadcast %cst_13 : f32 to vector<16x64xf32>
    %22 = arith.mulf %21, %20 : vector<16x64xf32>
    %cst_14 = arith.constant 0.707106769 : f32
    %23 = vector.broadcast %cst_14 : f32 to vector<16x64xf32>
    %24 = arith.mulf %20, %23 : vector<16x64xf32>
    %25 = math.erf %24 : vector<16x64xf32>
    %cst_15 = arith.constant 1.000000e+00 : f32
    %26 = vector.broadcast %cst_15 : f32 to vector<16x64xf32>
    %27 = arith.addf %26, %25 : vector<16x64xf32>
    %28 = arith.mulf %22, %27 : vector<16x64xf32>
    %29 = arith.truncf %28 : vector<16x64xf32> to vector<16x64xbf16>
    %c0_16 = arith.constant 0 : index
    %c0_17 = arith.constant 0 : index
    %30 = vector.load %arg4[%c0_16, %c0_17] : memref<64x16xbf16, #tpu.memory_space<vmem>>, vector<64x16xbf16>
    %cst_18 = arith.constant dense<0.000000e+00> : vector<16x16xf32>
    %31 = tpu.matmul %29, %30, %cst_18 {dimension_numbers = #tpu.dot_dimension_numbers<[1], [0], [0], [1], [0, 0, 1, 1], [], []>} : vector<16x64xbf16>, vector<64x16xbf16>, vector<16x16xf32> -> vector<16x16xf32>
    %c0_19 = arith.constant 0 : index
    %c0_20 = arith.constant 0 : index
    %32 = vector.load %arg7[%c0_19, %c0_20] : memref<1x16xf32, #tpu.memory_space<vmem>>, vector<1x16xf32>
    %33 = vector.broadcast %32 : vector<1x16xf32> to vector<16x16xf32>
    %34 = arith.addf %31, %33 : vector<16x16xf32>
    %c0_21 = arith.constant 0 : index
    %c0_22 = arith.constant 0 : index
    %35 = vector.load %arg8[%c0_21, %c0_22] : memref<16x16xf32, #tpu.memory_space<vmem>>, vector<16x16xf32>
    tpu.vector_store %arg8[%c0_21, %c0_22], %34 {strides = array<i32>} : memref<16x16xf32, #tpu.memory_space<vmem>>, vector<16x16xf32>,
    return
  }
  func.func @transform_0(%arg0: i32) -> (i32, i32) {
    %c0_i32 = arith.constant 0 : i32
    %c0_i32_0 = arith.constant 0 : i32
    return %arg0, %c0_i32 : i32, i32
  }
  func.func @transform_1(%arg0: i32) -> (i32, i32) {
    %c0_i32 = arith.constant 0 : i32
    %c0_i32_0 = arith.constant 0 : i32
    %c0_i32_1 = arith.constant 0 : i32
    return %c0_i32, %c0_i32_0 : i32, i32
  }
  func.func @transform_2(%arg0: i32) -> (i32, i32) {
    %c0_i32 = arith.constant 0 : i32
    %c0_i32_0 = arith.constant 0 : i32
    %c0_i32_1 = arith.constant 0 : i32
    return %c0_i32, %c0_i32_0 : i32, i32
  }
  func.func @transform_3(%arg0: i32) -> (i32, i32) {
    %c0_i32 = arith.constant 0 : i32
    %c0_i32_0 = arith.constant 0 : i32
    %c0_i32_1 = arith.constant 0 : i32
    return %c0_i32, %c0_i32_0 : i32, i32
  }
  func.func @transform_4(%arg0: i32) -> (i32, i32) {
    %c0_i32 = arith.constant 0 : i32
    %c0_i32_0 = arith.constant 0 : i32
    %c0_i32_1 = arith.constant 0 : i32
    return %c0_i32, %c0_i32_0 : i32, i32
  }
  func.func @transform_5(%arg0: i32) -> (i32, i32) {
    %c0_i32 = arith.constant 0 : i32
    %c0_i32_0 = arith.constant 0 : i32
    %c0_i32_1 = arith.constant 0 : i32
    return %c0_i32, %c0_i32_0 : i32, i32
  }
  func.func @transform_6(%arg0: i32) -> (i32, i32) {
    %c0_i32 = arith.constant 0 : i32
    %c0_i32_0 = arith.constant 0 : i32
    %c0_i32_1 = arith.constant 0 : i32
    return %c0_i32, %c0_i32_0 : i32, i32
  }
  func.func @transform_7(%arg0: i32) -> (i32, i32) {
    %c0_i32 = arith.constant 0 : i32
    %c0_i32_0 = arith.constant 0 : i32
    return %arg0, %c0_i32 : i32, i32
  }
}

</mosaic_0001>

<llo_original>
// kernel: lipshitz_mlp_forward.1
$region0: #{lipshitz_mlp_forward.1}
  #allocation0 [shape = 'u32[]', space=smem, size = 0x4, offset = 0x4, fixed_abs, tag = 'smem constant byte address 0x4 - core index']
  #allocation1 [shape = 'u32[144,128]{1,0:T(1,128)}', space=vmem, size = 0x12000, scoped, tag = 'internal scratch']
  %s0 = inlined_call_operand.vmem [shape: f32[16,32], index: 0, kind: input, shape index: {}]
  %s1 = inlined_call_operand.vmem [shape: bf16[32,64], index: 1, kind: input, shape index: {}]
  %s2 = inlined_call_operand.vmem [shape: bf16[64,64], index: 2, kind: input, shape index: {}]
  %s3 = inlined_call_operand.vmem [shape: bf16[64,16], index: 3, kind: input, shape index: {}]
  %s4 = inlined_call_operand.vmem [shape: f32[1,64], index: 4, kind: input, shape index: {}]
  %s5 = inlined_call_operand.vmem [shape: f32[1,64], index: 5, kind: input, shape index: {}]
  %s6 = inlined_call_operand.vmem [shape: f32[1,16], index: 6, kind: input, shape index: {}]
  %s7 = inlined_call_operand.vmem [shape: f32[16,16], index: 7, kind: output, shape index: {}]
  %s8 = sld [smem:[#allocation0]]
  $region38: #{lipshitz_mlp_forward.1} parent=0
    _
  %s10 = ssub.s32 1, %s8
  %s11 = scalar_select 0, %s10, %s8
  // Predicated region
  $region2: #{lipshitz_mlp_forward.1} parent=0 // pred_check
    _
  $region3: #{lipshitz_mlp_forward.1} parent=0 // pred_check_branch
    %13 = sbr.rel (0) target = $region5
  $region4: #{lipshitz_mlp_forward.1} parent=0 // pred_region
    _
  $region5: #{lipshitz_mlp_forward.1} parent=0 // pred_fallthru
    _
  // Predicated region
  $region6: #{lipshitz_mlp_forward.1} parent=0 // pred_check
    _
  $region7: #{lipshitz_mlp_forward.1} parent=0 // pred_check_branch
    %15 = sbr.rel (0) target = $region9
  $region8: #{lipshitz_mlp_forward.1} parent=0 // pred_region
    _
  $region9: #{lipshitz_mlp_forward.1} parent=0 // pred_fallthru
    _
  // Predicated region
  $region10: #{lipshitz_mlp_forward.1} parent=0 // pred_check
    _
  $region11: #{lipshitz_mlp_forward.1} parent=0 // pred_check_branch
    %17 = sbr.rel (0) target = $region13
  $region12: #{lipshitz_mlp_forward.1} parent=0 // pred_region
    _
  $region13: #{lipshitz_mlp_forward.1} parent=0 // pred_fallthru
    _
  // Predicated region
  $region14: #{lipshitz_mlp_forward.1} parent=0 // pred_check
    _
  $region15: #{lipshitz_mlp_forward.1} parent=0 // pred_check_branch
    %19 = sbr.rel (0) target = $region17
  $region16: #{lipshitz_mlp_forward.1} parent=0 // pred_region
    _
  $region17: #{lipshitz_mlp_forward.1} parent=0 // pred_fallthru
    _
  // Predicated region
  $region18: #{lipshitz_mlp_forward.1} parent=0 // pred_check
    _
  $region19: #{lipshitz_mlp_forward.1} parent=0 // pred_check_branch
    %21 = sbr.rel (0) target = $region21
  $region20: #{lipshitz_mlp_forward.1} parent=0 // pred_region
    _
  $region21: #{lipshitz_mlp_forward.1} parent=0 // pred_fallthru
    _
  // Predicated region
  $region22: #{lipshitz_mlp_forward.1} parent=0 // pred_check
    _
  $region23: #{lipshitz_mlp_forward.1} parent=0 // pred_check_branch
    %23 = sbr.rel (0) target = $region25
  $region24: #{lipshitz_mlp_forward.1} parent=0 // pred_region
    _
  $region25: #{lipshitz_mlp_forward.1} parent=0 // pred_fallthru
    _
  // Predicated region
  $region26: #{lipshitz_mlp_forward.1} parent=0 // pred_check
    _
  $region27: #{lipshitz_mlp_forward.1} parent=0 // pred_check_branch
    %25 = sbr.rel (0) target = $region29
  $region28: #{lipshitz_mlp_forward.1} parent=0 // pred_region
    _
  $region29: #{lipshitz_mlp_forward.1} parent=0 // pred_fallthru
    _
  %v27 = vld [vmem:[%s0] sm:$0xff]
  %v28 = vld [vmem:[%s0 + $0x8] sm:$0xff]
  %v29 = vpack.c.bf16 %v28, %v27
  %v30 = vld [vmem:[%s1] sm:$0xf]
  %v31 = vld [vmem:[%s1 + $0x4] sm:$0xf]
  %v32 = vld [vmem:[%s1 + $0x8] sm:$0xf]
  %v33 = vld [vmem:[%s1 + $0xc] sm:$0xf]
  %v34 = vld [vmem:[%s4] sm:$0x1]
  %v36 = vlaneseq
  %v37 = vshrl.u32 %v36, 7
  %v38 = vsub.s32 0, %v37
  %v39 = vrot.slane %v34, %v38
  %v45 = vunpack.c.l.b16 %v30
  %v46 = vunpack.c.l.b16 %v31
  %v47 = vunpack.c.l.b16 %v32
  %v48 = vunpack.c.l.b16 %v33
  %v49 = vpack.c.b16 %v46, %v45
  %v50 = vpack.c.b16 %v48, %v47
  %vm53 = vcmask 261120
  %v55 = vsel %vm53, %v29, 0
  %57 = vmatprep.subr.bf16.mxu0 0
  %58 = vmatpush1.bf16.msra.mxu0 %v49
  %59 = vmatprep.subr.bf16.mxu0 0
  %60 = vmatpush1.bf16.msra.mxu0 %v50
  %61 = vmatprep.subr.bf16.mxu0 0
  %62 = vmatpush1.bf16.msra.mxu0 0
  %63 = vmatprep.subr.bf16.mxu0 0
  %64 = vmatpush1.bf16.msra.mxu0 0
  %65 = vmatprep.subr.bf16.mxu0 0
  %66 = vmatpush1.bf16.msra.mxu0 0
  %67 = vmatprep.subr.bf16.mxu0 0
  %68 = vmatpush1.bf16.msra.mxu0 0
  %69 = vmatprep.subr.bf16.mxu0 0
  %70 = vmatpush1.bf16.msra.mxu0 0
  %71 = vmatprep.subr.bf16.mxu0 0
  %72 = vmatpush1.bf16.msra.mxu0 0
  %73 = vmatprep.subr.bf16.mxu0 0
  %74 = vmatpush1.bf16.msra.mxu0 0
  %75 = vmatprep.subr.bf16.mxu0 0
  %76 = vmatpush1.bf16.msra.mxu0 0
  %77 = vmatprep.subr.bf16.mxu0 0
  %78 = vmatpush1.bf16.msra.mxu0 0
  %79 = vmatprep.subr.bf16.mxu0 0
  %80 = vmatpush1.bf16.msra.mxu0 0
  %81 = vmatprep.subr.bf16.mxu0 0
  %82 = vmatpush1.bf16.msra.mxu0 0
  %83 = vmatprep.subr.bf16.mxu0 0
  %84 = vmatpush1.bf16.msra.mxu0 0
  %85 = vmatprep.subr.bf16.mxu0 0
  %86 = vmatpush1.bf16.msra.mxu0 0
  %87 = vmatprep.subr.bf16.mxu0 0
  %88 = vmatpush1.bf16.msra.mxu0 0
  %89 = vmatprep.mubr.bf16.mxu0 0
  %90 = vmatmul.mubr.bf16.gmra.mrb[0].mxu0 %v55
  %v91 = vpop.f32.mrb[0].mxu0
  %v92 = vadd.f32 %v39, %v91
  %v93 = vpop.f32.mrb[0].mxu0
  %v94 = vpop.f32.mrb[0].mxu0
  %v95 = vadd.f32 %v39, %v94
  %v96 = vpop.f32.mrb[0].mxu0
  %97 = vdwg.mxu0
  %v98 = vmul.f32 %v92, 0.5
  %v99 = vmul.f32 %v95, 0.5
  %v100 = vmul.f32 %v92, 0.70710677
  %v101 = vmul.f32 %v95, 0.70710677
  %v102 = verf.f32.pop %v100
  %v103 = verf.f32.pop %v101
  %v104 = vadd.f32 %v102, 1.0
  %v105 = vadd.f32 %v103, 1.0
  %v106 = vmul.f32 %v98, %v104
  %v107 = vmul.f32 %v99, %v105
  %v108 = vpack.c.bf16 %v107, %v106
  %v109 = vld [vmem:[%s2] sm:$0xf]
  %v110 = vld [vmem:[%s2 + $0x4] sm:$0xf]
  %v111 = vld [vmem:[%s2 + $0x8] sm:$0xf]
  %v112 = vld [vmem:[%s2 + $0xc] sm:$0xf]
  %v113 = vld [vmem:[%s2 + $0x10] sm:$0xf]
  %v114 = vld [vmem:[%s2 + $0x14] sm:$0xf]
  %v115 = vld [vmem:[%s2 + $0x18] sm:$0xf]
  %v116 = vld [vmem:[%s2 + $0x1c] sm:$0xf]
  %v117 = vld [vmem:[%s5] sm:$0x1]
  %v119 = vlaneseq
  %v120 = vshrl.u32 %v119, 7
  %v121 = vsub.s32 0, %v120
  %v122 = vrot.slane %v117, %v121
  %v132 = vunpack.c.l.b16 %v109
  %v133 = vunpack.c.l.b16 %v110
  %v134 = vunpack.c.l.b16 %v111
  %v135 = vunpack.c.l.b16 %v112
  %v136 = vunpack.c.l.b16 %v113
  %v137 = vunpack.c.l.b16 %v114
  %v138 = vunpack.c.l.b16 %v115
  %v139 = vunpack.c.l.b16 %v116
  %v140 = vpack.c.b16 %v133, %v132
  %v141 = vpack.c.b16 %v135, %v134
  %v142 = vpack.c.b16 %v137, %v136
  %v143 = vpack.c.b16 %v139, %v138
  %vm148 = vcmask 523264
  %v150 = vsel %vm148, %v108, 0
  %152 = vmatprep.subr.bf16.mxu0 0
  %153 = vmatpush1.bf16.msra.mxu0 %v140
  %154 = vmatprep.subr.bf16.mxu0 0
  %155 = vmatpush1.bf16.msra.mxu0 %v141
  %156 = vmatprep.subr.bf16.mxu0 0
  %157 = vmatpush1.bf16.msra.mxu0 %v142
  %158 = vmatprep.subr.bf16.mxu0 0
  %159 = vmatpush1.bf16.msra.mxu0 %v143
  %160 = vmatprep.subr.bf16.mxu0 0
  %161 = vmatpush1.bf16.msra.mxu0 0
  %162 = vmatprep.subr.bf16.mxu0 0
  %163 = vmatpush1.bf16.msra.mxu0 0
  %164 = vmatprep.subr.bf16.mxu0 0
  %165 = vmatpush1.bf16.msra.mxu0 0
  %166 = vmatprep.subr.bf16.mxu0 0
  %167 = vmatpush1.bf16.msra.mxu0 0
  %168 = vmatprep.subr.bf16.mxu0 0
  %169 = vmatpush1.bf16.msra.mxu0 0
  %170 = vmatprep.subr.bf16.mxu0 0
  %171 = vmatpush1.bf16.msra.mxu0 0
  %172 = vmatprep.subr.bf16.mxu0 0
  %173 = vmatpush1.bf16.msra.mxu0 0
  %174 = vmatprep.subr.bf16.mxu0 0
  %175 = vmatpush1.bf16.msra.mxu0 0
  %176 = vmatprep.subr.bf16.mxu0 0
  %177 = vmatpush1.bf16.msra.mxu0 0
  %178 = vmatprep.subr.bf16.mxu0 0
  %179 = vmatpush1.bf16.msra.mxu0 0
  %180 = vmatprep.subr.bf16.mxu0 0
  %181 = vmatpush1.bf16.msra.mxu0 0
  %182 = vmatprep.subr.bf16.mxu0 0
  %183 = vmatpush1.bf16.msra.mxu0 0
  %184 = vmatprep.mubr.bf16.mxu0 0
  %185 = vmatmul.mubr.bf16.gmra.mrb[0].mxu0 %v150
  %v186 = vpop.f32.mrb[0].mxu0
  %v187 = vadd.f32 %v122, %v186
  %v188 = vpop.f32.mrb[0].mxu0
  %v189 = vpop.f32.mrb[0].mxu0
  %v190 = vadd.f32 %v122, %v189
  %v191 = vpop.f32.mrb[0].mxu0
  %192 = vdwg.mxu0
  %v193 = vmul.f32 %v187, 0.5
  %v194 = vmul.f32 %v190, 0.5
  %v195 = vmul.f32 %v187, 0.70710677
  %v196 = vmul.f32 %v190, 0.70710677
  %v197 = verf.f32.pop %v195
  %v198 = verf.f32.pop %v196
  %v199 = vadd.f32 %v197, 1.0
  %v200 = vadd.f32 %v198, 1.0
  %v201 = vmul.f32 %v193, %v199
  %v202 = vmul.f32 %v194, %v200
  %v203 = vpack.c.bf16 %v202, %v201
  %v204 = vld [vmem:[%s3] sm:$0xf]
  %v205 = vld [vmem:[%s3 + $0x4] sm:$0xf]
  %v206 = vld [vmem:[%s3 + $0x8] sm:$0xf]
  %v207 = vld [vmem:[%s3 + $0xc] sm:$0xf]
  %v208 = vld [vmem:[%s3 + $0x10] sm:$0xf]
  %v209 = vld [vmem:[%s3 + $0x14] sm:$0xf]
  %v210 = vld [vmem:[%s3 + $0x18] sm:$0xf]
  %v211 = vld [vmem:[%s3 + $0x1c] sm:$0xf]
  %v212 = vld [vmem:[%s6] sm:$0x1]
  %v214 = vlaneseq
  %v215 = vshrl.u32 %v214, 7
  %v216 = vsub.s32 0, %v215
  %v217 = vrot.slane %v212, %v216
  %v227 = vunpack.c.l.b16 %v204
  %v228 = vunpack.c.l.b16 %v205
  %v229 = vunpack.c.l.b16 %v206
  %v230 = vunpack.c.l.b16 %v207
  %v231 = vunpack.c.l.b16 %v208
  %v232 = vunpack.c.l.b16 %v209
  %v233 = vunpack.c.l.b16 %v210
  %v234 = vunpack.c.l.b16 %v211
  %v235 = vpack.c.b16 %v228, %v227
  %v236 = vpack.c.b16 %v230, %v229
  %v237 = vpack.c.b16 %v232, %v231
  %v238 = vpack.c.b16 %v234, %v233
  %v244 = vsel %vm148, %v203, 0
  %246 = vmatprep.subr.bf16.mxu0 0
  %247 = vmatpush1.bf16.msra.mxu0 %v235
  %248 = vmatprep.subr.bf16.mxu0 0
  %249 = vmatpush1.bf16.msra.mxu0 %v236
  %250 = vmatprep.subr.bf16.mxu0 0
  %251 = vmatpush1.bf16.msra.mxu0 %v237
  %252 = vmatprep.subr.bf16.mxu0 0
  %253 = vmatpush1.bf16.msra.mxu0 %v238
  %254 = vmatprep.subr.bf16.mxu0 0
  %255 = vmatpush1.bf16.msra.mxu0 0
  %256 = vmatprep.subr.bf16.mxu0 0
  %257 = vmatpush1.bf16.msra.mxu0 0
  %258 = vmatprep.subr.bf16.mxu0 0
  %259 = vmatpush1.bf16.msra.mxu0 0
  %260 = vmatprep.subr.bf16.mxu0 0
  %261 = vmatpush1.bf16.msra.mxu0 0
  %262 = vmatprep.subr.bf16.mxu0 0
  %263 = vmatpush1.bf16.msra.mxu0 0
  %264 = vmatprep.subr.bf16.mxu0 0
  %265 = vmatpush1.bf16.msra.mxu0 0
  %266 = vmatprep.subr.bf16.mxu0 0
  %267 = vmatpush1.bf16.msra.mxu0 0
  %268 = vmatprep.subr.bf16.mxu0 0
  %269 = vmatpush1.bf16.msra.mxu0 0
  %270 = vmatprep.subr.bf16.mxu0 0
  %271 = vmatpush1.bf16.msra.mxu0 0
  %272 = vmatprep.subr.bf16.mxu0 0
  %273 = vmatpush1.bf16.msra.mxu0 0
  %274 = vmatprep.subr.bf16.mxu0 0
  %275 = vmatpush1.bf16.msra.mxu0 0
  %276 = vmatprep.subr.bf16.mxu0 0
  %277 = vmatpush1.bf16.msra.mxu0 0
  %278 = vmatprep.mubr.bf16.mxu0 0
  %279 = vmatmul.mubr.bf16.gmra.mrb[0].mxu0 %v244
  %v280 = vpop.f32.mrb[0].mxu0
  %v281 = vadd.f32 %v217, %v280
  %v282 = vpop.f32.mrb[0].mxu0
  %v283 = vpop.f32.mrb[0].mxu0
  %v284 = vadd.f32 %v217, %v283
  %v285 = vpop.f32.mrb[0].mxu0
  %286 = vdwg.mxu0
  %vm287 = vcmask 130048
  %288 = vst.msk [vmem:[%s7] sm:$0xff] %vm287, %v281
  %289 = vst.msk [vmem:[%s7 + $0x8] sm:$0xff] %vm287, %v284
  // Predicated region
  $region30: #{lipshitz_mlp_forward.1} parent=0 // pred_check
    _
  $region31: #{lipshitz_mlp_forward.1} parent=0 // pred_check_branch
    %291 = sbr.rel (0) target = $region33
  $region32: #{lipshitz_mlp_forward.1} parent=0 // pred_region
    _
  $region33: #{lipshitz_mlp_forward.1} parent=0 // pred_fallthru
    _
  // Predicated region
  $region34: #{lipshitz_mlp_forward.1} parent=0 // pred_check
    _
  $region35: #{lipshitz_mlp_forward.1} parent=0 // pred_check_branch
    %293 = sbr.rel (0) target = $region37
  $region36: #{lipshitz_mlp_forward.1} parent=0 // pred_region
    _
  $region37: #{lipshitz_mlp_forward.1} parent=0 // pred_fallthru
    _

</llo_original>
